<compile_context>
chip_gen: v6e
topology: v6e:2x2x1
jax: 0.10.0
libtpu: 0.0.40
codegen_flags: <defaults>
</compile_context>

<pallas_src>
import functools
import math
import numpy as np
import jax
import jax.numpy as jnp
from jax.experimental import pallas as pl
from jax.experimental.pallas import tpu as pltpu


_VMEM_BUDGET = 26 * 1024 * 1024   # target pipeline footprint (tiles + weight)
_VMEM_LIMIT = 32 * 1024 * 1024    # scoped-VMEM limit (raises v5e's 16 MiB default)


def _round_up(x, m):
    return ((x + m - 1) // m) * m


def _sublane(dtype):
    # rows per (sublane, 128) tile: 8 for f32, 16 for bf16, 32 for int8/fp8
    return max(8, 32 // jnp.dtype(dtype).itemsize)


def _project_readout_kernel(tok_ref, robias_ref, w_ref, o_ref, *, approximate_gelu):
    # tok_ref:    (1, tm, C)  patch-token tile (compute dtype: f32 or bf16)
    # robias_ref: (1, 1,  C)  f32 per-batch (readout @ W_ro.T + b) row
    # w_ref:      (C, C)      token half of the weight, pre-transposed to [in, out]
    # o_ref:      (1, tm, C)  output tile
    tok = tok_ref[0]                                           # [tm, C_in]

    # Single MXU matmul per tile, f32 accumulation.
    acc = jnp.dot(tok, w_ref[...], preferred_element_type=jnp.float32)   # [tm, C_out]

    # Folded readout projection + bias, added in f32 (broadcast over the tile).
    acc = acc + robias_ref[0]                                  # [1, C] broadcasts

    if approximate_gelu:
        # tanh-approx GELU (single EUP tanh) — opt-in for VALU-bound small-C cases.
        out = jax.nn.gelu(acc, approximate=True)
    else:
        # Exact (erf) GELU in f32, matching torch.nn.GELU() default.
        inv_sqrt2 = jnp.float32(0.7071067811865476)
        out = 0.5 * acc * (1.0 + jax.lax.erf(acc * inv_sqrt2))

    o_ref[0] = out.astype(o_ref.dtype)


def _choose_tile(Np, B, tm_req, compute_dtype, out_dtype, C):
    """Pick a balanced, sublane-aligned, VMEM-budgeted token tile."""
    sub = max(_sublane(compute_dtype), _sublane(out_dtype))
    isz_c = jnp.dtype(compute_dtype).itemsize
    isz_o = jnp.dtype(out_dtype).itemsize

    # VMEM budget: double-buffered token/out tiles + (worst case) a
    # double-buffered weight + the tiny ro_bias rows.
    w_bytes = 2 * C * C * isz_c
    per_row = C * (2 * isz_c + 2 * isz_o)
    avail = max(_VMEM_BUDGET - w_bytes - 2 * C * 4, per_row * sub)
    tm_fit = max(sub, (avail // per_row) // sub * sub)

    tm_max = max(sub, min(int(tm_req), tm_fit))
    tm_max = (tm_max // sub) * sub

    nt = pl.cdiv(Np, tm_max)
    # v7x: keep >= 2 independent ("parallel") grid iterations so both
    # TensorCores get work even at B == 1.  (Harmless on v5e/v6e.)
    if B * nt < 2 and Np > sub:
        nt = 2
    # Balance tiles so there is no tiny tail tile.
    tm = min(_round_up(pl.cdiv(Np, nt), sub), tm_max)
    if tm >= Np:
        return Np, 1                      # full-extent block (always layout-legal)
    return tm, pl.cdiv(Np, tm)


def project_readout_tokens(tokens, cls_token, weight, bias, *, tm=1024,
                           compute_dtype=jnp.bfloat16, out_dtype=None,
                           approximate_gelu=False):
    """Production entry point (no x[:, 1:] slice needed by the caller).

    tokens:    [B, Np, C]  patch tokens (x[:, 1:])
    cls_token: [B, C]      readout token (x[:, 0])
    weight:    [C, 2C]     torch Linear weight, [out_features, in_features]
    bias:      [C]
    returns    [B, Np, C]
    """
    B, Np, C = tokens.shape
    if compute_dtype is None:
        compute_dtype = tokens.dtype
    if out_dtype is None:
        out_dtype = tokens.dtype

    # Fold the readout projection and bias into one [B, 1, C] f32 bias row
    # (tiny XLA matmul, done once per call instead of once per grid step).
    w_ro = weight[:, C:]                                           # [C_out, C_in]
    ro_bias = jax.lax.dot_general(
        cls_token.astype(jnp.float32), w_ro.astype(jnp.float32),
        dimension_numbers=(((1,), (1,)), ((), ())))                # [B, C_out]
    ro_bias = (ro_bias + bias.astype(jnp.float32)).reshape(B, 1, C)

    # Token half of the weight, pre-transposed once to [in, out] so the kernel
    # runs a plain [M,K]x[K,N] MXU matmul (weight is resident, transpose is free).
    w_tok = jnp.transpose(weight[:, :C]).astype(compute_dtype)     # [C_in, C_out]
    tokens_c = tokens.astype(compute_dtype)

    tm_eff, nt = _choose_tile(Np, B, tm, compute_dtype, out_dtype, C)
    grid = (B, nt)

    cost = pl.CostEstimate(
        flops=2 * B * Np * C * C + 8 * B * Np * C,
        transcendentals=B * Np * C,
        bytes_accessed=(B * Np * C * (jnp.dtype(compute_dtype).itemsize
                                      + jnp.dtype(out_dtype).itemsize)
                        + C * C * jnp.dtype(compute_dtype).itemsize
                        + B * C * 4))

    kernel = functools.partial(_project_readout_kernel,
                               approximate_gelu=approximate_gelu)

    def _call(single_buffer_weight):
        w_kwargs = {}
        if single_buffer_weight:
            # Constant index_map: the weight is never re-fetched, so keeping a
            # second buffer is pure VMEM waste.
            w_kwargs["pipeline_mode"] = pl.Buffered(1)
        return pl.pallas_call(
            kernel,
            out_shape=jax.ShapeDtypeStruct((B, Np, C), out_dtype),
            grid_spec=pltpu.PrefetchScalarGridSpec(
                num_scalar_prefetch=0,
                grid=grid,
                in_specs=[
                    pl.BlockSpec((1, tm_eff, C), lambda b, i: (b, i, 0)),  # token tile
                    pl.BlockSpec((1, 1, C), lambda b, i: (b, 0, 0)),       # folded readout bias
                    pl.BlockSpec((C, C), lambda b, i: (0, 0), **w_kwargs), # resident weight
                ],
                out_specs=pl.BlockSpec((1, tm_eff, C), lambda b, i: (b, i, 0)),
            ),
            compiler_params=pltpu.CompilerParams(
                dimension_semantics=("parallel", "parallel"),
                vmem_limit_bytes=_VMEM_LIMIT),
            cost_estimate=cost,
        )(tokens_c, ro_bias, w_tok)

    try:
        return _call(single_buffer_weight=True)
    except Exception:
        # Fallback for lowerings without pipeline_mode=Buffered(1) support.
        return _call(single_buffer_weight=False)


def project_readout(x, weight, bias, *, tm=1024, compute_dtype=None,
                    approximate_gelu=False):
    """Drop-in wrapper matching the nn.Module forward: x [B, N, C] -> [B, N-1, C].

    compute_dtype=None keeps exact drop-in numerics (matmul in x.dtype);
    pass jnp.bfloat16 — or use project_readout_tokens, whose production
    default is bf16 — for full MXU rate with f32 accumulation.
    """
    B, N, C = x.shape
    # TODO(synk): x[:, 1:] is one extra HBM pass in XLA; callers that already
    # hold patch tokens and the CLS token separately should call
    # project_readout_tokens() directly to avoid it.
    tokens = x[:, 1:, :]
    cls_token = x[:, 0, :]
    if compute_dtype is None:
        compute_dtype = x.dtype
    return project_readout_tokens(tokens, cls_token, weight, bias, tm=tm,
                                  compute_dtype=compute_dtype, out_dtype=x.dtype,
                                  approximate_gelu=approximate_gelu)


def _reference(x, weight, bias):
    B, N, C = x.shape
    readout = jnp.broadcast_to(x[:, 0:1, :], (B, N - 1, C))
    features = jnp.concatenate([x[:, 1:, :], readout], axis=-1)   # [B, N-1, 2C]
    y = features @ weight.T + bias
    return jax.nn.gelu(y, approximate=False)


if __name__ == "__main__":
    key = jax.random.PRNGKey(0)
    # 1 readout token + 20 patch tokens, in_features = 32 (small test shapes;
    # real DPT deployments keep C a multiple of 128 for lane-dense stores).
    B, N, C = 2, 21, 32

    k_x, k_w, k_b = jax.random.split(key, 3)
    x = jax.random.normal(k_x, (B, N, C), dtype=jnp.float32)

    # torch default Linear(2C, C) init bound 1/sqrt(fan_in)
    bound = 1.0 / math.sqrt(2 * C)
    weight = jax.random.uniform(k_w, (C, 2 * C), minval=-bound, maxval=bound,
                                dtype=jnp.float32)
    bias = jax.random.uniform(k_b, (C,), minval=-bound, maxval=bound,
                              dtype=jnp.float32)

    ref = _reference(x, weight, bias)

    # (1) Drop-in f32 path (single full-Np tile per batch): exact-GELU parity.
    out = jax.block_until_ready(project_readout(x, weight, bias))
    np.testing.assert_allclose(np.asarray(out), np.asarray(ref),
                               rtol=1e-4, atol=1e-5)

    # (2) Forced multi-tile path (balanced tiles + masked tail), still f32-exact.
    out_tiled = jax.block_until_ready(project_readout(x, weight, bias, tm=8))
    np.testing.assert_allclose(np.asarray(out_tiled), np.asarray(ref),
                               rtol=1e-4, atol=1e-5)

    # (3) Production path: separate token/CLS inputs, bf16 compute (default),
    #     f32 accumulation + f32 GELU inside the kernel.
    out_prod = jax.block_until_ready(
        project_readout_tokens(x[:, 1:, :], x[:, 0, :], weight, bias,
                               out_dtype=jnp.float32))
    np.testing.assert_allclose(np.asarray(out_prod), np.asarray(ref),
                               rtol=2e-2, atol=2e-2)

    # (4) bf16 I/O drop-in path (f32 accumulation inside the kernel).
    xb = x.astype(jnp.bfloat16)
    wb = weight.astype(jnp.bfloat16)
    bb = bias.astype(jnp.bfloat16)
    out_bf16 = jax.block_until_ready(project_readout(xb, wb, bb))
    ref_bf16 = _reference(xb.astype(jnp.float32), wb.astype(jnp.float32),
                          bb.astype(jnp.float32))
    np.testing.assert_allclose(np.asarray(out_bf16.astype(jnp.float32)),
                               np.asarray(ref_bf16), rtol=2e-2, atol=2e-2)

    print("KERNEL_OK")
</pallas_src>

<mosaic_0001>
module attributes {stable_mosaic.version = 11 : i64} {
  func.func @_project_readout_kernel(%arg0: i32, %arg1: i32, %arg2: memref<1x20x32xf32, #tpu.memory_space<vmem>>, %arg3: memref<1x1x32xf32, #tpu.memory_space<vmem>>, %arg4: memref<32x32xf32, #tpu.memory_space<vmem>>, %arg5: memref<1x20x32xf32, #tpu.memory_space<vmem>>) attributes {dimension_semantics = [#tpu.dimension_semantics<parallel>, #tpu.dimension_semantics<parallel>], iteration_bounds = array<i64: 2, 1>, scalar_prefetch = 0 : i64, scratch_operands = 0 : i64, tpu.core_type = #tpu.core_type<tc>, window_params = [{transform_indices = @transform_0, window_bounds = array<i64: 1, 20, 32>}, {transform_indices = @transform_1, window_bounds = array<i64: 1, 1, 32>}, {pipeline_mode = #tpu.pipeline_mode<synchronous>, transform_indices = @transform_2, window_bounds = array<i64: 32, 32>}, {transform_indices = @transform_3, window_bounds = array<i64: 1, 20, 32>}]} {
    %c0 = arith.constant 0 : index
    %c0_0 = arith.constant 0 : index
    %c0_1 = arith.constant 0 : index
    %0 = vector.load %arg2[%c0, %c0_0, %c0_1] : memref<1x20x32xf32, #tpu.memory_space<vmem>>, vector<1x20x32xf32>
    %1 = vector.shape_cast %0 : vector<1x20x32xf32> to vector<20x32xf32>
    %c0_2 = arith.constant 0 : index
    %c0_3 = arith.constant 0 : index
    %2 = vector.load %arg4[%c0_2, %c0_3] : memref<32x32xf32, #tpu.memory_space<vmem>>, vector<32x32xf32>
    %cst = arith.constant dense<0.000000e+00> : vector<20x32xf32>
    %3 = tpu.matmul %1, %2, %cst {dimension_numbers = #tpu.dot_dimension_numbers<[1], [0], [0], [1], [0, 0, 1, 1], [], []>} : vector<20x32xf32>, vector<32x32xf32>, vector<20x32xf32> -> vector<20x32xf32>
    %c0_4 = arith.constant 0 : index
    %c0_5 = arith.constant 0 : index
    %c0_6 = arith.constant 0 : index
    %4 = vector.load %arg3[%c0_4, %c0_5, %c0_6] : memref<1x1x32xf32, #tpu.memory_space<vmem>>, vector<1x1x32xf32>
    %5 = vector.shape_cast %4 : vector<1x1x32xf32> to vector<1x32xf32>
    %6 = vector.broadcast %5 : vector<1x32xf32> to vector<20x32xf32>
    %7 = arith.addf %3, %6 : vector<20x32xf32>
    %cst_7 = arith.constant 5.000000e-01 : f32
    %8 = vector.broadcast %cst_7 : f32 to vector<20x32xf32>
    %9 = arith.mulf %8, %7 : vector<20x32xf32>
    %cst_8 = arith.constant 0.707106769 : f32
    %10 = vector.broadcast %cst_8 : f32 to vector<20x32xf32>
    %11 = arith.mulf %7, %10 : vector<20x32xf32>
    %12 = math.erf %11 : vector<20x32xf32>
    %cst_9 = arith.constant 1.000000e+00 : f32
    %13 = vector.broadcast %cst_9 : f32 to vector<20x32xf32>
    %14 = arith.addf %13, %12 : vector<20x32xf32>
    %15 = arith.mulf %9, %14 : vector<20x32xf32>
    %c0_10 = arith.constant 0 : index
    %c0_11 = arith.constant 0 : index
    %c0_12 = arith.constant 0 : index
    %16 = vector.load %arg5[%c0_10, %c0_11, %c0_12] : memref<1x20x32xf32, #tpu.memory_space<vmem>>, vector<1x20x32xf32>
    %17 = vector.shape_cast %16 : vector<1x20x32xf32> to vector<20x32xf32>
    %18 = vector.shape_cast %15 : vector<20x32xf32> to vector<1x20x32xf32>
    tpu.vector_store %arg5[%c0_10, %c0_11, %c0_12], %18 {strides = array<i32>} : memref<1x20x32xf32, #tpu.memory_space<vmem>>, vector<1x20x32xf32>,
    return
  }
  func.func @transform_0(%arg0: i32, %arg1: i32) -> (i32, i32, i32) {
    %c0_i32 = arith.constant 0 : i32
    %c0_i32_0 = arith.constant 0 : i32
    return %arg0, %arg1, %c0_i32 : i32, i32, i32
  }
  func.func @transform_1(%arg0: i32, %arg1: i32) -> (i32, i32, i32) {
    %c0_i32 = arith.constant 0 : i32
    %c0_i32_0 = arith.constant 0 : i32
    %c0_i32_1 = arith.constant 0 : i32
    return %arg0, %c0_i32, %c0_i32_0 : i32, i32, i32
  }
  func.func @transform_2(%arg0: i32, %arg1: i32) -> (i32, i32) {
    %c0_i32 = arith.constant 0 : i32
    %c0_i32_0 = arith.constant 0 : i32
    %c0_i32_1 = arith.constant 0 : i32
    return %c0_i32, %c0_i32_0 : i32, i32
  }
  func.func @transform_3(%arg0: i32, %arg1: i32) -> (i32, i32, i32) {
    %c0_i32 = arith.constant 0 : i32
    %c0_i32_0 = arith.constant 0 : i32
    return %arg0, %arg1, %c0_i32 : i32, i32, i32
  }
}

module attributes {stable_mosaic.version = 11 : i64} {
  func.func @_project_readout_kernel(%arg0: i32, %arg1: i32, %arg2: memref<1x20x32xf32, #tpu.memory_space<vmem>>, %arg3: memref<1x1x32xf32, #tpu.memory_space<vmem>>, %arg4: memref<32x32xf32, #tpu.memory_space<vmem>>, %arg5: memref<1x20x32xf32, #tpu.memory_space<vmem>>) attributes {dimension_semantics = [#tpu.dimension_semantics<parallel>, #tpu.dimension_semantics<parallel>], iteration_bounds = array<i64: 2, 1>, scalar_prefetch = 0 : i64, scratch_operands = 0 : i64, tpu.core_type = #tpu.core_type<tc>, window_params = [{transform_indices = @transform_0, window_bounds = array<i64: 1, 20, 32>}, {transform_indices = @transform_1, window_bounds = array<i64: 1, 1, 32>}, {pipeline_mode = #tpu.pipeline_mode<synchronous>, transform_indices = @transform_2, window_bounds = array<i64: 32, 32>}, {transform_indices = @transform_3, window_bounds = array<i64: 1, 20, 32>}]} {
    %c0 = arith.constant 0 : index
    %c0_0 = arith.constant 0 : index
    %c0_1 = arith.constant 0 : index
    %0 = vector.load %arg2[%c0, %c0_0, %c0_1] : memref<1x20x32xf32, #tpu.memory_space<vmem>>, vector<1x20x32xf32>
    %1 = vector.shape_cast %0 : vector<1x20x32xf32> to vector<20x32xf32>
    %c0_2 = arith.constant 0 : index
    %c0_3 = arith.constant 0 : index
    %2 = vector.load %arg4[%c0_2, %c0_3] : memref<32x32xf32, #tpu.memory_space<vmem>>, vector<32x32xf32>
    %cst = arith.constant dense<0.000000e+00> : vector<20x32xf32>
    %3 = tpu.matmul %1, %2, %cst {dimension_numbers = #tpu.dot_dimension_numbers<[1], [0], [0], [1], [0, 0, 1, 1], [], []>} : vector<20x32xf32>, vector<32x32xf32>, vector<20x32xf32> -> vector<20x32xf32>
    %c0_4 = arith.constant 0 : index
    %c0_5 = arith.constant 0 : index
    %c0_6 = arith.constant 0 : index
    %4 = vector.load %arg3[%c0_4, %c0_5, %c0_6] : memref<1x1x32xf32, #tpu.memory_space<vmem>>, vector<1x1x32xf32>
    %5 = vector.shape_cast %4 : vector<1x1x32xf32> to vector<1x32xf32>
    %6 = vector.broadcast %5 : vector<1x32xf32> to vector<20x32xf32>
    %7 = arith.addf %3, %6 : vector<20x32xf32>
    %cst_7 = arith.constant 5.000000e-01 : f32
    %8 = vector.broadcast %cst_7 : f32 to vector<20x32xf32>
    %9 = arith.mulf %8, %7 : vector<20x32xf32>
    %cst_8 = arith.constant 0.707106769 : f32
    %10 = vector.broadcast %cst_8 : f32 to vector<20x32xf32>
    %11 = arith.mulf %7, %10 : vector<20x32xf32>
    %12 = math.erf %11 : vector<20x32xf32>
    %cst_9 = arith.constant 1.000000e+00 : f32
    %13 = vector.broadcast %cst_9 : f32 to vector<20x32xf32>
    %14 = arith.addf %13, %12 : vector<20x32xf32>
    %15 = arith.mulf %9, %14 : vector<20x32xf32>
    %c0_10 = arith.constant 0 : index
    %c0_11 = arith.constant 0 : index
    %c0_12 = arith.constant 0 : index
    %16 = vector.load %arg5[%c0_10, %c0_11, %c0_12] : memref<1x20x32xf32, #tpu.memory_space<vmem>>, vector<1x20x32xf32>
    %17 = vector.shape_cast %16 : vector<1x20x32xf32> to vector<20x32xf32>
    %18 = vector.shape_cast %15 : vector<20x32xf32> to vector<1x20x32xf32>
    tpu.vector_store %arg5[%c0_10, %c0_11, %c0_12], %18 {strides = array<i32>} : memref<1x20x32xf32, #tpu.memory_space<vmem>>, vector<1x20x32xf32>,
    return
  }
  func.func @transform_0(%arg0: i32, %arg1: i32) -> (i32, i32, i32) {
    %c0_i32 = arith.constant 0 : i32
    %c0_i32_0 = arith.constant 0 : i32
    return %arg0, %arg1, %c0_i32 : i32, i32, i32
  }
  func.func @transform_1(%arg0: i32, %arg1: i32) -> (i32, i32, i32) {
    %c0_i32 = arith.constant 0 : i32
    %c0_i32_0 = arith.constant 0 : i32
    %c0_i32_1 = arith.constant 0 : i32
    return %arg0, %c0_i32, %c0_i32_0 : i32, i32, i32
  }
  func.func @transform_2(%arg0: i32, %arg1: i32) -> (i32, i32) {
    %c0_i32 = arith.constant 0 : i32
    %c0_i32_0 = arith.constant 0 : i32
    %c0_i32_1 = arith.constant 0 : i32
    return %c0_i32, %c0_i32_0 : i32, i32
  }
  func.func @transform_3(%arg0: i32, %arg1: i32) -> (i32, i32, i32) {
    %c0_i32 = arith.constant 0 : i32
    %c0_i32_0 = arith.constant 0 : i32
    return %arg0, %arg1, %c0_i32 : i32, i32, i32
  }
}

</mosaic_0001>

<llo_original>
// kernel: tpu_custom_call.1
$region0: #{tpu_custom_call.1}
  #allocation0 [shape = 'u32[]', space=smem, size = 0x4, offset = 0x4, fixed_abs, tag = 'smem constant byte address 0x4 - core index']
  #allocation1 [shape = 'u32[144,128]{1,0:T(1,128)}', space=vmem, size = 0x12000, scoped, tag = 'internal scratch']
  %s0 = inlined_call_operand.vmem [shape: f32[2,20,32], index: 0, kind: input, shape index: {}]
  %s1 = inlined_call_operand.vmem [shape: f32[2,1,32], index: 1, kind: input, shape index: {}]
  %s2 = inlined_call_operand.vmem [shape: f32[32,32], index: 2, kind: input, shape index: {}]
  %s3 = inlined_call_operand.vmem [shape: f32[2,20,32], index: 3, kind: output, shape index: {}]
  %s4 = sld [smem:[#allocation0]]
  $region45: #{tpu_custom_call.1} parent=0
    _
  %s6 = ssub.s32 1, %s4
  %s7 = scalar_select 0, %s6, %s4
  loop: start=0, step=1, limit=4
  $region2: #{tpu_custom_call.1} parent=0 // loop_pre_header
    _
  $region3: #{tpu_custom_call.1} parent=0 // loop_header
    %s9 = sphi 0, %s13
    %p10 = scmp.ge.s32.totalorder %s9, 4
    %s16 = sphi 0, %s28
    %s17 = sphi 0, %s24
    %s18 = sphi 0, %s16
    %s19 = sphi 0, %s17
    %s20 = sphi 0, %s18
    %s21 = sphi 0, %s19
    %s33 = sphi 0, %s35
    %s36 = sphi 0, %s33
    %s37 = sphi 0, %s36
    %s53 = sphi 0, %s37
    %s59 = sphi 0, %s61
    %s62 = sphi 0, %s59
    %s63 = sphi 0, %s62
    %s79 = sphi 0, %s63
    %s83 = sphi 0, %s83
    %s85 = sphi 0, %s83
    %s86 = sphi 0, %s85
    %s100 = sphi 0, %s86
    %s108 = sphi 0, %s110
    %s111 = sphi 0, %s108
    %s112 = sphi 0, %s111
    %s128 = sphi 0, %s112
  $region4: #{tpu_custom_call.1} parent=0 // loop_header_branch
    %12 = sbr.rel (%p10) target = $region8
  $region5: #{tpu_custom_call.1} parent=0 // loop_body
    %s14 = ssub.s32 %s9, 1
    %s15 = ssub.s32 %s9, 2
    %s22 = sadd.s32 1, %s17
    %p23 = scmp.ge.s32.totalorder %s22, 1
    %s24 = scalar_select %p23, 0, %s22
    %s25 = sadd.s32 1, %s16
    %s26 = scalar_select %p23, %s25, %s16
    %p27 = scmp.ge.s32.totalorder %s26, 2
    %s28 = scalar_select %p27, 0, %s26
    %s29 = ssub.s32 %s16, %s28
    %s30 = ssub.s32 %s17, %s24
    %s31 = sor.u32 %s29, %s30
    %p32 = scmp.eq.s32.totalorder %s31, 0
    %s34 = sadd.s32 %s33, 1
    %s35 = scalar_select %p32, %s33, %s34
    %p38 = pneg %p32
    %p39 = scmp.eq.s32.totalorder %s9, 1
    %p40 = por %p38, %p39
    %p41 = scmp.ne.s32.totalorder %s33, %s36
    %p42 = scmp.eq.s32.totalorder %s9, 0
    %p43 = por %p41, %p42
    %p44 = scmp.ne.s32.totalorder %s33, %s36
    %p45 = scmp.eq.s32.totalorder %s14, 1
    %p46 = por %p44, %p45
    %p47 = scmp.ne.s32.totalorder %s36, %s37
    %p48 = scmp.eq.s32.totalorder %s14, 0
    %p49 = por %p47, %p48
    %p50 = scmp.ne.s32.totalorder %s36, %s37
    %p51 = scmp.eq.s32.totalorder %s15, 1
    %p52 = por %p50, %p51
    %p54 = scmp.ne.s32.totalorder %s37, %s53
    %p55 = scmp.eq.s32.totalorder %s15, 0
    %p56 = por %p54, %p55
    %s57 = ssub.s32 %s16, %s28
    %p58 = scmp.eq.s32.totalorder %s57, 0
    %s60 = sadd.s32 %s59, 1
    %s61 = scalar_select %p58, %s59, %s60
    %p64 = pneg %p58
    %p65 = scmp.eq.s32.totalorder %s9, 1
    %p66 = por %p64, %p65
    %p67 = scmp.ne.s32.totalorder %s59, %s62
    %p68 = scmp.eq.s32.totalorder %s9, 0
    %p69 = por %p67, %p68
    %p70 = scmp.ne.s32.totalorder %s59, %s62
    %p71 = scmp.eq.s32.totalorder %s14, 1
    %p72 = por %p70, %p71
    %p73 = scmp.ne.s32.totalorder %s62, %s63
    %p74 = scmp.eq.s32.totalorder %s14, 0
    %p75 = por %p73, %p74
    %p76 = scmp.ne.s32.totalorder %s62, %s63
    %p77 = scmp.eq.s32.totalorder %s15, 1
    %p78 = por %p76, %p77
    %p80 = scmp.ne.s32.totalorder %s63, %s79
    %p81 = scmp.eq.s32.totalorder %s15, 0
    %p82 = por %p80, %p81
    %s84 = sadd.s32 %s83, 1
    %p87 = scmp.eq.s32.totalorder %s9, 1
    %p88 = scmp.ne.s32.totalorder %s83, %s85
    %p89 = scmp.eq.s32.totalorder %s9, 0
    %p90 = por %p88, %p89
    %p91 = scmp.ne.s32.totalorder %s83, %s85
    %p92 = scmp.eq.s32.totalorder %s14, 1
    %p93 = por %p91, %p92
    %p94 = scmp.ne.s32.totalorder %s85, %s86
    %p95 = scmp.eq.s32.totalorder %s14, 0
    %p96 = por %p94, %p95
    %p97 = scmp.ne.s32.totalorder %s85, %s86
    %p98 = scmp.eq.s32.totalorder %s15, 1
    %p99 = por %p97, %p98
    %p101 = scmp.ne.s32.totalorder %s86, %s100
    %p102 = scmp.eq.s32.totalorder %s15, 0
    %p103 = por %p101, %p102
    %s104 = ssub.s32 %s16, %s28
    %s105 = ssub.s32 %s17, %s24
    %s106 = sor.u32 %s104, %s105
    %p107 = scmp.eq.s32.totalorder %s106, 0
    %s109 = sadd.s32 %s108, 1
    %s110 = scalar_select %p107, %s108, %s109
    %p113 = pneg %p107
    %p114 = scmp.eq.s32.totalorder %s9, 1
    %p115 = por %p113, %p114
    %p116 = scmp.ne.s32.totalorder %s108, %s111
    %p117 = scmp.eq.s32.totalorder %s9, 0
    %p118 = por %p116, %p117
    %p119 = scmp.ne.s32.totalorder %s108, %s111
    %p120 = scmp.eq.s32.totalorder %s14, 1
    %p121 = por %p119, %p120
    %p122 = scmp.ne.s32.totalorder %s111, %s112
    %p123 = scmp.eq.s32.totalorder %s14, 0
    %p124 = por %p122, %p123
    %p125 = scmp.ne.s32.totalorder %s111, %s112
    %p126 = scmp.eq.s32.totalorder %s15, 1
    %p127 = por %p125, %p126
    %p129 = scmp.ne.s32.totalorder %s112, %s128
    %p130 = scmp.eq.s32.totalorder %s15, 0
    %p131 = por %p129, %p130
    %p132 = scmp.le.s32.totalorder 1, %s9
    %p133 = scmp.lt.s32.totalorder %s9, 3
    %p134 = pnand %p132, %p133
    %p135 = pneg %p134
    // Predicated region
    $region9: #{tpu_custom_call.1} parent=5 // pred_check
      _
    $region10: #{tpu_custom_call.1} parent=5 // pred_check_branch
      %137 = sbr.rel (%p134) target = $region12
    $region11: #{tpu_custom_call.1} parent=5 // pred_region
      %s138 = ssub.s32 %s9, 1
      // Predicated region
      $region13: #{tpu_custom_call.1} parent=11 // pred_check
        %p139 = pneg %p96
      $region14: #{tpu_custom_call.1} parent=11 // pred_check_branch
        %141 = sbr.rel (%p139) target = $region16
      $region15: #{tpu_custom_call.1} parent=11 // pred_region
        _
      $region16: #{tpu_custom_call.1} parent=11 // pred_fallthru
        _
    $region12: #{tpu_custom_call.1} parent=5 // pred_fallthru
      _
    %p142 = scmp.lt.s32.totalorder %s9, 2
    // Predicated region
    $region17: #{tpu_custom_call.1} parent=5 // pred_check
      %p143 = pneg %p142
    $region18: #{tpu_custom_call.1} parent=5 // pred_check_branch
      %145 = sbr.rel (%p143) target = $region20
    $region19: #{tpu_custom_call.1} parent=5 // pred_region
      // Predicated region
      $region21: #{tpu_custom_call.1} parent=19 // pred_check
        %p146 = pneg %p43
      $region22: #{tpu_custom_call.1} parent=19 // pred_check_branch
        %148 = sbr.rel (%p146) target = $region24
      $region23: #{tpu_custom_call.1} parent=19 // pred_region
        %s149 = smul.u32 3, %s17
        %p150 = scmp.lt.s32.totalorder %s16, 1
        %s151 = scalar_select %p150, %s16, 1
        %p152 = scmp.lt.s32.totalorder %s149, 2
        %s153 = scalar_select %p152, %s149, 2
        %s154 = smul.addr %s151, 3
        %s155 = sadd.s32 %s153, %s154
        %s156 = smul.addr %s155, 8
        %s157 = scalar_lea.vmem %s0, %s156
        %s158 = smul.u32 3, %s17
      $region24: #{tpu_custom_call.1} parent=19 // pred_fallthru
        _
      // Predicated region
      $region25: #{tpu_custom_call.1} parent=19 // pred_check
        %p159 = pneg %p69
      $region26: #{tpu_custom_call.1} parent=19 // pred_check_branch
        %161 = sbr.rel (%p159) target = $region28
      $region27: #{tpu_custom_call.1} parent=19 // pred_region
        %p162 = scmp.lt.s32.totalorder %s16, 1
        %s163 = scalar_select %p162, %s16, 1
        %s164 = scalar_lea.vmem %s1, %s163
      $region28: #{tpu_custom_call.1} parent=19 // pred_fallthru
        _
    $region20: #{tpu_custom_call.1} parent=5 // pred_fallthru
      _
    %p165 = scmp.le.s32.totalorder 1, %s9
    %p166 = scmp.lt.s32.totalorder %s9, 3
    %p167 = pnand %p165, %p166
    %p168 = pneg %p167
    // Predicated region
    $region29: #{tpu_custom_call.1} parent=5 // pred_check
      _
    $region30: #{tpu_custom_call.1} parent=5 // pred_check_branch
      %170 = sbr.rel (%p167) target = $region32
    $region31: #{tpu_custom_call.1} parent=5 // pred_region
      %s171 = ssub.s32 %s9, 1
      %s172 = smul.u32 3, %s19
      %p173 = scmp.lt.s32.totalorder %s18, 1
      %s174 = scalar_select %p173, %s18, 1
      %p175 = scmp.lt.s32.totalorder %s172, 2
      %s176 = scalar_select %p175, %s172, 2
      %s177 = smul.addr %s174, 3
      %s178 = sadd.s32 %s176, %s177
      %s179 = smul.addr %s178, 8
      %s180 = scalar_lea.vmem %s0, %s179
      %p181 = pneg %p49
      %p182 = pneg %p46
      %p183 = scmp.lt.s32.totalorder %s18, 1
      %s184 = scalar_select %p183, %s18, 1
      %s185 = scalar_lea.vmem %s1, %s184
      %p186 = pneg %p75
      %p187 = pneg %p72
      %p188 = pneg %p96
      %p189 = pneg %p93
      %p190 = pneg %p124
      %p191 = pneg %p121
      %s192 = smul.u32 3, %s19
      %p193 = scmp.lt.s32.totalorder %s18, 1
      %s194 = scalar_select %p193, %s18, 1
      %p195 = scmp.lt.s32.totalorder %s192, 2
      %s196 = scalar_select %p195, %s192, 2
      %s197 = smul.addr %s194, 3
      %s198 = sadd.s32 %s196, %s197
      %s199 = smul.addr %s198, 8
      %s200 = scalar_lea.vmem %s3, %s199
      %s201 = smul.u32 3, %s19
      %p202 = scmp.lt.s32.totalorder %s18, 1
      %s203 = scalar_select %p202, %s18, 1
      %p204 = scmp.lt.s32.totalorder %s201, 2
      %s205 = scalar_select %p204, %s201, 2
      %s206 = smul.addr %s203, 3
      %s207 = sadd.s32 %s205, %s206
      %s208 = smul.addr %s207, 8
      %s209 = scalar_lea.vmem %s0, %s208
      %s210 = smul.u32 3, %s19
      %p211 = scmp.lt.s32.totalorder %s18, 1
      %s212 = scalar_select %p211, %s18, 1
      %s213 = scalar_lea.vmem %s1, %s212
      %s214 = smul.u32 3, %s19
      %p215 = scmp.lt.s32.totalorder %s18, 1
      %s216 = scalar_select %p215, %s18, 1
      %p217 = scmp.lt.s32.totalorder %s214, 2
      %s218 = scalar_select %p217, %s214, 2
      %s219 = smul.addr %s216, 3
      %s220 = sadd.s32 %s218, %s219
      %s221 = smul.addr %s220, 8
      %s222 = scalar_lea.vmem %s3, %s221
      %s223 = smul.u32 3, %s19
      %v224 = vld [vmem:[%s209] sm:$0xff]
      %v225 = vld [vmem:[%s209 + $0x8] sm:$0xff]
      %v226 = vld [vmem:[%s209 + $0x10] sm:$0xf]
      %v227 = vld [vmem:[%s2] sm:$0xff]
      %v228 = vld [vmem:[%s2 + $0x8] sm:$0xff]
      %v229 = vld [vmem:[%s2 + $0x10] sm:$0xff]
      %v230 = vld [vmem:[%s2 + $0x18] sm:$0xff]
      %v231 = vld [vmem:[%s213] sm:$0x1]
      %v233 = vlaneseq
      %v234 = vshrl.u32 %v233, 7
      %v235 = vsub.s32 0, %v234
      %v236 = vrot.slane %v231, %v235
      %vm238 = vcmask 261120
      %v240 = vsel %vm238, %v224, 0
      %v243 = vsel %vm238, %v225, 0
      %v246 = vsel %vm238, %v226, 0
      %248 = vmatprep.subr.mxu0 0.0
      %249 = vmatpush1.msra.mxu0 0.0
      %250 = vmatprep.subr.mxu0 0.0
      %251 = vmatpush1.msra.mxu0 0.0
      %252 = vmatprep.subr.mxu0 0.0
      %253 = vmatpush1.msra.mxu0 0.0
      %254 = vmatprep.subr.mxu0 0.0
      %255 = vmatpush1.msra.mxu0 0.0
      %256 = vmatprep.subr.mxu0 0.0
      %257 = vmatpush1.msra.mxu0 0.0
      %258 = vmatprep.subr.mxu0 0.0
      %259 = vmatpush1.msra.mxu0 0.0
      %260 = vmatprep.subr.mxu0 0.0
      %261 = vmatpush1.msra.mxu0 0.0
      %262 = vmatprep.subr.mxu0 0.0
      %263 = vmatpush1.msra.mxu0 0.0
      %264 = vmatprep.subr.mxu0 0.0
      %265 = vmatpush1.msra.mxu0 0.0
      %266 = vmatprep.subr.mxu0 0.0
      %267 = vmatpush1.msra.mxu0 0.0
      %268 = vmatprep.subr.mxu0 0.0
      %269 = vmatpush1.msra.mxu0 0.0
      %270 = vmatprep.subr.mxu0 0.0
      %271 = vmatpush1.msra.mxu0 0.0
      %272 = vmatprep.subr.mxu0 0.0
      %273 = vmatpush1.msra.mxu0 %v230
      %274 = vmatprep.subr.mxu0 0.0
      %275 = vmatpush1.msra.mxu0 %v229
      %276 = vmatprep.subr.mxu0 0.0
      %277 = vmatpush1.msra.mxu0 %v228
      %278 = vmatprep.subr.mxu0 0.0
      %279 = vmatpush1.msra.mxu0 %v227
      %280 = vmatprep.subr.mxu0 0.0
      %281 = vmatpush2.msra.mxu0 0.0
      %282 = vmatprep.subr.mxu0 0.0
      %283 = vmatpush2.msra.mxu0 0.0
      %284 = vmatprep.subr.mxu0 0.0
      %285 = vmatpush2.msra.mxu0 0.0
      %286 = vmatprep.subr.mxu0 0.0
      %287 = vmatpush2.msra.mxu0 0.0
      %288 = vmatprep.subr.mxu0 0.0
      %289 = vmatpush2.msra.mxu0 0.0
      %290 = vmatprep.subr.mxu0 0.0
      %291 = vmatpush2.msra.mxu0 0.0
      %292 = vmatprep.subr.mxu0 0.0
      %293 = vmatpush2.msra.mxu0 0.0
      %294 = vmatprep.subr.mxu0 0.0
      %295 = vmatpush2.msra.mxu0 0.0
      %296 = vmatprep.subr.mxu0 0.0
      %297 = vmatpush2.msra.mxu0 0.0
      %298 = vmatprep.subr.mxu0 0.0
      %299 = vmatpush2.msra.mxu0 0.0
      %300 = vmatprep.subr.mxu0 0.0
      %301 = vmatpush2.msra.mxu0 0.0
      %302 = vmatprep.subr.mxu0 0.0
      %303 = vmatpush2.msra.mxu0 0.0
      %304 = vmatprep.subr.mxu0 0.0
      %305 = vmatpush2.msra.mxu0 0.0
      %306 = vmatprep.subr.mxu0 0.0
      %307 = vmatpush2.msra.mxu0 0.0
      %308 = vmatprep.subr.mxu0 0.0
      %309 = vmatpush2.msra.mxu0 0.0
      %310 = vmatprep.subr.mxu0 0.0
      %311 = vmatpush2.msra.mxu0 0.0
      %312 = vmatprep.mubr.f32.mxu0 0.0
      %313 = vmatmul.mubr.f32.gmra.mxu0 %v240
      %v314 = vpop.f32.mrf.mxu0
      %v315 = vadd.f32 %v236, %v314
      %v316 = vpop.f32.mrf.mxu0
      %317 = vmatprep.mubr.f32.mxu0 0.0
      %318 = vmatmul.mubr.f32.gmra.mxu0 %v243
      %v319 = vpop.f32.mrf.mxu0
      %v320 = vadd.f32 %v236, %v319
      %v321 = vpop.f32.mrf.mxu0
      %322 = vmatprep.mubr.f32.mxu0 0.0
      %323 = vmatmul.mubr.f32.gmra.mxu0 %v246
      %v324 = vpop.f32.mrf.mxu0
      %v325 = vadd.f32 %v236, %v324
      %v326 = vpop.f32.mrf.mxu0
      %327 = vdwg.mxu0
      %v328 = vmul.f32 %v315, 0.5
      %v329 = vmul.f32 %v320, 0.5
      %v330 = vmul.f32 %v325, 0.5
      %v331 = vmul.f32 %v315, 0.70710677
      %v332 = vmul.f32 %v320, 0.70710677
      %v333 = vmul.f32 %v325, 0.70710677
      %v334 = verf.f32.pop %v331
      %v335 = verf.f32.pop %v332
      %v336 = verf.f32.pop %v333
      %v337 = vadd.f32 %v334, 1.0
      %v338 = vadd.f32 %v335, 1.0
      %v339 = vadd.f32 %v336, 1.0
      %v340 = vmul.f32 %v328, %v337
      %v341 = vmul.f32 %v329, %v338
      %v342 = vmul.f32 %v330, %v339
      %343 = vst.msk [vmem:[%s222] sm:$0xff] %vm238, %v340
      %344 = vst.msk [vmem:[%s222 + $0x8] sm:$0xff] %vm238, %v341
      %vm345 = vcmask 257024
      %346 = vst.msk [vmem:[%s222 + $0x10] sm:$0xf] %vm345, %v342
      %s347 = smul.u32 3, %s19
      %p348 = scmp.lt.s32.totalorder %s18, 1
      %s349 = scalar_select %p348, %s18, 1
      %p350 = scmp.lt.s32.totalorder %s347, 2
      %s351 = scalar_select %p350, %s347, 2
      %s352 = smul.addr %s349, 3
      %s353 = sadd.s32 %s351, %s352
      %s354 = smul.addr %s353, 8
      %s355 = scalar_lea.vmem %s3, %s354
      // Predicated region
      $region33: #{tpu_custom_call.1} parent=31 // pred_check
        %p356 = pneg %p121
      $region34: #{tpu_custom_call.1} parent=31 // pred_check_branch
        %358 = sbr.rel (%p356) target = $region36
      $region35: #{tpu_custom_call.1} parent=31 // pred_region
        %s359 = smul.u32 3, %s19
      $region36: #{tpu_custom_call.1} parent=31 // pred_fallthru
        _
    $region32: #{tpu_custom_call.1} parent=5 // pred_fallthru
      _
    %p360 = scmp.le.s32.totalorder 2, %s9
    // Predicated region
    $region37: #{tpu_custom_call.1} parent=5 // pred_check
      %p361 = pneg %p360
    $region38: #{tpu_custom_call.1} parent=5 // pred_check_branch
      %363 = sbr.rel (%p361) target = $region40
    $region39: #{tpu_custom_call.1} parent=5 // pred_region
      %s364 = ssub.s32 %s9, 2
      // Predicated region
      $region41: #{tpu_custom_call.1} parent=39 // pred_check
        %p365 = pneg %p127
      $region42: #{tpu_custom_call.1} parent=39 // pred_check_branch
        %367 = sbr.rel (%p365) target = $region44
      $region43: #{tpu_custom_call.1} parent=39 // pred_region
        %s368 = smul.u32 3, %s21
        %p369 = scmp.lt.s32.totalorder %s20, 1
        %s370 = scalar_select %p369, %s20, 1
        %p371 = scmp.lt.s32.totalorder %s368, 2
        %s372 = scalar_select %p371, %s368, 2
        %s373 = smul.addr %s370, 3
        %s374 = sadd.s32 %s372, %s373
        %s375 = smul.addr %s374, 8
        %s376 = scalar_lea.vmem %s3, %s375
      $region44: #{tpu_custom_call.1} parent=39 // pred_fallthru
        _
    $region40: #{tpu_custom_call.1} parent=5 // pred_fallthru
      _
  $region6: #{tpu_custom_call.1} parent=0 // loop_footer
    %s13 = sadd.s32 1, %s9
  $region7: #{tpu_custom_call.1} parent=0 // loop_footer_branch
    %8 = sbr.rel target = $region3
  $region8: #{tpu_custom_call.1} parent=0 // loop_exit
    _

// kernel: tpu_custom_call.1
$region0: #{tpu_custom_call.1}
  #allocation0 [shape = 'u32[]', space=smem, size = 0x4, offset = 0x4, fixed_abs, tag = 'smem constant byte address 0x4 - core index']
  #allocation1 [shape = 'u32[144,128]{1,0:T(1,128)}', space=vmem, size = 0x12000, scoped, tag = 'internal scratch']
  %s0 = inlined_call_operand.vmem [shape: f32[2,20,32], index: 0, kind: input, shape index: {}]
  %s1 = inlined_call_operand.vmem [shape: f32[2,1,32], index: 1, kind: input, shape index: {}]
  %s2 = inlined_call_operand.vmem [shape: f32[32,32], index: 2, kind: input, shape index: {}]
  %s3 = inlined_call_operand.vmem [shape: f32[2,20,32], index: 3, kind: output, shape index: {}]
  %s4 = sld [smem:[#allocation0]]
  $region45: #{tpu_custom_call.1} parent=0
    _
  %s6 = ssub.s32 1, %s4
  %s7 = scalar_select 0, %s6, %s4
  loop: start=0, step=1, limit=4
  $region2: #{tpu_custom_call.1} parent=0 // loop_pre_header
    _
  $region3: #{tpu_custom_call.1} parent=0 // loop_header
    %s9 = sphi 0, %s13
    %p10 = scmp.ge.s32.totalorder %s9, 4
    %s16 = sphi 0, %s28
    %s17 = sphi 0, %s24
    %s18 = sphi 0, %s16
    %s19 = sphi 0, %s17
    %s20 = sphi 0, %s18
    %s21 = sphi 0, %s19
    %s33 = sphi 0, %s35
    %s36 = sphi 0, %s33
    %s37 = sphi 0, %s36
    %s53 = sphi 0, %s37
    %s59 = sphi 0, %s61
    %s62 = sphi 0, %s59
    %s63 = sphi 0, %s62
    %s79 = sphi 0, %s63
    %s83 = sphi 0, %s83
    %s85 = sphi 0, %s83
    %s86 = sphi 0, %s85
    %s100 = sphi 0, %s86
    %s108 = sphi 0, %s110
    %s111 = sphi 0, %s108
    %s112 = sphi 0, %s111
    %s128 = sphi 0, %s112
  $region4: #{tpu_custom_call.1} parent=0 // loop_header_branch
    %12 = sbr.rel (%p10) target = $region8
  $region5: #{tpu_custom_call.1} parent=0 // loop_body
    %s14 = ssub.s32 %s9, 1
    %s15 = ssub.s32 %s9, 2
    %s22 = sadd.s32 1, %s17
    %p23 = scmp.ge.s32.totalorder %s22, 1
    %s24 = scalar_select %p23, 0, %s22
    %s25 = sadd.s32 1, %s16
    %s26 = scalar_select %p23, %s25, %s16
    %p27 = scmp.ge.s32.totalorder %s26, 2
    %s28 = scalar_select %p27, 0, %s26
    %s29 = ssub.s32 %s16, %s28
    %s30 = ssub.s32 %s17, %s24
    %s31 = sor.u32 %s29, %s30
    %p32 = scmp.eq.s32.totalorder %s31, 0
    %s34 = sadd.s32 %s33, 1
    %s35 = scalar_select %p32, %s33, %s34
    %p38 = pneg %p32
    %p39 = scmp.eq.s32.totalorder %s9, 1
    %p40 = por %p38, %p39
    %p41 = scmp.ne.s32.totalorder %s33, %s36
    %p42 = scmp.eq.s32.totalorder %s9, 0
    %p43 = por %p41, %p42
    %p44 = scmp.ne.s32.totalorder %s33, %s36
    %p45 = scmp.eq.s32.totalorder %s14, 1
    %p46 = por %p44, %p45
    %p47 = scmp.ne.s32.totalorder %s36, %s37
    %p48 = scmp.eq.s32.totalorder %s14, 0
    %p49 = por %p47, %p48
    %p50 = scmp.ne.s32.totalorder %s36, %s37
    %p51 = scmp.eq.s32.totalorder %s15, 1
    %p52 = por %p50, %p51
    %p54 = scmp.ne.s32.totalorder %s37, %s53
    %p55 = scmp.eq.s32.totalorder %s15, 0
    %p56 = por %p54, %p55
    %s57 = ssub.s32 %s16, %s28
    %p58 = scmp.eq.s32.totalorder %s57, 0
    %s60 = sadd.s32 %s59, 1
    %s61 = scalar_select %p58, %s59, %s60
    %p64 = pneg %p58
    %p65 = scmp.eq.s32.totalorder %s9, 1
    %p66 = por %p64, %p65
    %p67 = scmp.ne.s32.totalorder %s59, %s62
    %p68 = scmp.eq.s32.totalorder %s9, 0
    %p69 = por %p67, %p68
    %p70 = scmp.ne.s32.totalorder %s59, %s62
    %p71 = scmp.eq.s32.totalorder %s14, 1
    %p72 = por %p70, %p71
    %p73 = scmp.ne.s32.totalorder %s62, %s63
    %p74 = scmp.eq.s32.totalorder %s14, 0
    %p75 = por %p73, %p74
    %p76 = scmp.ne.s32.totalorder %s62, %s63
    %p77 = scmp.eq.s32.totalorder %s15, 1
    %p78 = por %p76, %p77
    %p80 = scmp.ne.s32.totalorder %s63, %s79
    %p81 = scmp.eq.s32.totalorder %s15, 0
    %p82 = por %p80, %p81
    %s84 = sadd.s32 %s83, 1
    %p87 = scmp.eq.s32.totalorder %s9, 1
    %p88 = scmp.ne.s32.totalorder %s83, %s85
    %p89 = scmp.eq.s32.totalorder %s9, 0
    %p90 = por %p88, %p89
    %p91 = scmp.ne.s32.totalorder %s83, %s85
    %p92 = scmp.eq.s32.totalorder %s14, 1
    %p93 = por %p91, %p92
    %p94 = scmp.ne.s32.totalorder %s85, %s86
    %p95 = scmp.eq.s32.totalorder %s14, 0
    %p96 = por %p94, %p95
    %p97 = scmp.ne.s32.totalorder %s85, %s86
    %p98 = scmp.eq.s32.totalorder %s15, 1
    %p99 = por %p97, %p98
    %p101 = scmp.ne.s32.totalorder %s86, %s100
    %p102 = scmp.eq.s32.totalorder %s15, 0
    %p103 = por %p101, %p102
    %s104 = ssub.s32 %s16, %s28
    %s105 = ssub.s32 %s17, %s24
    %s106 = sor.u32 %s104, %s105
    %p107 = scmp.eq.s32.totalorder %s106, 0
    %s109 = sadd.s32 %s108, 1
    %s110 = scalar_select %p107, %s108, %s109
    %p113 = pneg %p107
    %p114 = scmp.eq.s32.totalorder %s9, 1
    %p115 = por %p113, %p114
    %p116 = scmp.ne.s32.totalorder %s108, %s111
    %p117 = scmp.eq.s32.totalorder %s9, 0
    %p118 = por %p116, %p117
    %p119 = scmp.ne.s32.totalorder %s108, %s111
    %p120 = scmp.eq.s32.totalorder %s14, 1
    %p121 = por %p119, %p120
    %p122 = scmp.ne.s32.totalorder %s111, %s112
    %p123 = scmp.eq.s32.totalorder %s14, 0
    %p124 = por %p122, %p123
    %p125 = scmp.ne.s32.totalorder %s111, %s112
    %p126 = scmp.eq.s32.totalorder %s15, 1
    %p127 = por %p125, %p126
    %p129 = scmp.ne.s32.totalorder %s112, %s128
    %p130 = scmp.eq.s32.totalorder %s15, 0
    %p131 = por %p129, %p130
    %p132 = scmp.le.s32.totalorder 1, %s9
    %p133 = scmp.lt.s32.totalorder %s9, 3
    %p134 = pnand %p132, %p133
    %p135 = pneg %p134
    // Predicated region
    $region9: #{tpu_custom_call.1} parent=5 // pred_check
      _
    $region10: #{tpu_custom_call.1} parent=5 // pred_check_branch
      %137 = sbr.rel (%p134) target = $region12
    $region11: #{tpu_custom_call.1} parent=5 // pred_region
      %s138 = ssub.s32 %s9, 1
      // Predicated region
      $region13: #{tpu_custom_call.1} parent=11 // pred_check
        %p139 = pneg %p96
      $region14: #{tpu_custom_call.1} parent=11 // pred_check_branch
        %141 = sbr.rel (%p139) target = $region16
      $region15: #{tpu_custom_call.1} parent=11 // pred_region
        _
      $region16: #{tpu_custom_call.1} parent=11 // pred_fallthru
        _
    $region12: #{tpu_custom_call.1} parent=5 // pred_fallthru
      _
    %p142 = scmp.lt.s32.totalorder %s9, 2
    // Predicated region
    $region17: #{tpu_custom_call.1} parent=5 // pred_check
      %p143 = pneg %p142
    $region18: #{tpu_custom_call.1} parent=5 // pred_check_branch
      %145 = sbr.rel (%p143) target = $region20
    $region19: #{tpu_custom_call.1} parent=5 // pred_region
      // Predicated region
      $region21: #{tpu_custom_call.1} parent=19 // pred_check
        %p146 = pneg %p43
      $region22: #{tpu_custom_call.1} parent=19 // pred_check_branch
        %148 = sbr.rel (%p146) target = $region24
      $region23: #{tpu_custom_call.1} parent=19 // pred_region
        %s149 = smul.u32 3, %s17
        %p150 = scmp.lt.s32.totalorder %s16, 1
        %s151 = scalar_select %p150, %s16, 1
        %p152 = scmp.lt.s32.totalorder %s149, 2
        %s153 = scalar_select %p152, %s149, 2
        %s154 = smul.addr %s151, 3
        %s155 = sadd.s32 %s153, %s154
        %s156 = smul.addr %s155, 8
        %s157 = scalar_lea.vmem %s0, %s156
        %s158 = smul.u32 3, %s17
      $region24: #{tpu_custom_call.1} parent=19 // pred_fallthru
        _
      // Predicated region
      $region25: #{tpu_custom_call.1} parent=19 // pred_check
        %p159 = pneg %p69
      $region26: #{tpu_custom_call.1} parent=19 // pred_check_branch
        %161 = sbr.rel (%p159) target = $region28
      $region27: #{tpu_custom_call.1} parent=19 // pred_region
        %p162 = scmp.lt.s32.totalorder %s16, 1
        %s163 = scalar_select %p162, %s16, 1
        %s164 = scalar_lea.vmem %s1, %s163
      $region28: #{tpu_custom_call.1} parent=19 // pred_fallthru
        _
    $region20: #{tpu_custom_call.1} parent=5 // pred_fallthru
      _
    %p165 = scmp.le.s32.totalorder 1, %s9
    %p166 = scmp.lt.s32.totalorder %s9, 3
    %p167 = pnand %p165, %p166
    %p168 = pneg %p167
    // Predicated region
    $region29: #{tpu_custom_call.1} parent=5 // pred_check
      _
    $region30: #{tpu_custom_call.1} parent=5 // pred_check_branch
      %170 = sbr.rel (%p167) target = $region32
    $region31: #{tpu_custom_call.1} parent=5 // pred_region
      %s171 = ssub.s32 %s9, 1
      %s172 = smul.u32 3, %s19
      %p173 = scmp.lt.s32.totalorder %s18, 1
      %s174 = scalar_select %p173, %s18, 1
      %p175 = scmp.lt.s32.totalorder %s172, 2
      %s176 = scalar_select %p175, %s172, 2
      %s177 = smul.addr %s174, 3
      %s178 = sadd.s32 %s176, %s177
      %s179 = smul.addr %s178, 8
      %s180 = scalar_lea.vmem %s0, %s179
      %p181 = pneg %p49
      %p182 = pneg %p46
      %p183 = scmp.lt.s32.totalorder %s18, 1
      %s184 = scalar_select %p183, %s18, 1
      %s185 = scalar_lea.vmem %s1, %s184
      %p186 = pneg %p75
      %p187 = pneg %p72
      %p188 = pneg %p96
      %p189 = pneg %p93
      %p190 = pneg %p124
      %p191 = pneg %p121
      %s192 = smul.u32 3, %s19
      %p193 = scmp.lt.s32.totalorder %s18, 1
      %s194 = scalar_select %p193, %s18, 1
      %p195 = scmp.lt.s32.totalorder %s192, 2
      %s196 = scalar_select %p195, %s192, 2
      %s197 = smul.addr %s194, 3
      %s198 = sadd.s32 %s196, %s197
      %s199 = smul.addr %s198, 8
      %s200 = scalar_lea.vmem %s3, %s199
      %s201 = smul.u32 3, %s19
      %p202 = scmp.lt.s32.totalorder %s18, 1
      %s203 = scalar_select %p202, %s18, 1
      %p204 = scmp.lt.s32.totalorder %s201, 2
      %s205 = scalar_select %p204, %s201, 2
      %s206 = smul.addr %s203, 3
      %s207 = sadd.s32 %s205, %s206
      %s208 = smul.addr %s207, 8
      %s209 = scalar_lea.vmem %s0, %s208
      %s210 = smul.u32 3, %s19
      %p211 = scmp.lt.s32.totalorder %s18, 1
      %s212 = scalar_select %p211, %s18, 1
      %s213 = scalar_lea.vmem %s1, %s212
      %s214 = smul.u32 3, %s19
      %p215 = scmp.lt.s32.totalorder %s18, 1
      %s216 = scalar_select %p215, %s18, 1
      %p217 = scmp.lt.s32.totalorder %s214, 2
      %s218 = scalar_select %p217, %s214, 2
      %s219 = smul.addr %s216, 3
      %s220 = sadd.s32 %s218, %s219
      %s221 = smul.addr %s220, 8
      %s222 = scalar_lea.vmem %s3, %s221
      %s223 = smul.u32 3, %s19
      %v224 = vld [vmem:[%s209] sm:$0xff]
      %v225 = vld [vmem:[%s209 + $0x8] sm:$0xff]
      %v226 = vld [vmem:[%s209 + $0x10] sm:$0xf]
      %v227 = vld [vmem:[%s2] sm:$0xff]
      %v228 = vld [vmem:[%s2 + $0x8] sm:$0xff]
      %v229 = vld [vmem:[%s2 + $0x10] sm:$0xff]
      %v230 = vld [vmem:[%s2 + $0x18] sm:$0xff]
      %v231 = vld [vmem:[%s213] sm:$0x1]
      %v233 = vlaneseq
      %v234 = vshrl.u32 %v233, 7
      %v235 = vsub.s32 0, %v234
      %v236 = vrot.slane %v231, %v235
      %vm238 = vcmask 261120
      %v240 = vsel %vm238, %v224, 0
      %v243 = vsel %vm238, %v225, 0
      %v246 = vsel %vm238, %v226, 0
      %248 = vmatprep.subr.mxu0 0.0
      %249 = vmatpush1.msra.mxu0 0.0
      %250 = vmatprep.subr.mxu0 0.0
      %251 = vmatpush1.msra.mxu0 0.0
      %252 = vmatprep.subr.mxu0 0.0
      %253 = vmatpush1.msra.mxu0 0.0
      %254 = vmatprep.subr.mxu0 0.0
      %255 = vmatpush1.msra.mxu0 0.0
      %256 = vmatprep.subr.mxu0 0.0
      %257 = vmatpush1.msra.mxu0 0.0
      %258 = vmatprep.subr.mxu0 0.0
      %259 = vmatpush1.msra.mxu0 0.0
      %260 = vmatprep.subr.mxu0 0.0
      %261 = vmatpush1.msra.mxu0 0.0
      %262 = vmatprep.subr.mxu0 0.0
      %263 = vmatpush1.msra.mxu0 0.0
      %264 = vmatprep.subr.mxu0 0.0
      %265 = vmatpush1.msra.mxu0 0.0
      %266 = vmatprep.subr.mxu0 0.0
      %267 = vmatpush1.msra.mxu0 0.0
      %268 = vmatprep.subr.mxu0 0.0
      %269 = vmatpush1.msra.mxu0 0.0
      %270 = vmatprep.subr.mxu0 0.0
      %271 = vmatpush1.msra.mxu0 0.0
      %272 = vmatprep.subr.mxu0 0.0
      %273 = vmatpush1.msra.mxu0 %v230
      %274 = vmatprep.subr.mxu0 0.0
      %275 = vmatpush1.msra.mxu0 %v229
      %276 = vmatprep.subr.mxu0 0.0
      %277 = vmatpush1.msra.mxu0 %v228
      %278 = vmatprep.subr.mxu0 0.0
      %279 = vmatpush1.msra.mxu0 %v227
      %280 = vmatprep.subr.mxu0 0.0
      %281 = vmatpush2.msra.mxu0 0.0
      %282 = vmatprep.subr.mxu0 0.0
      %283 = vmatpush2.msra.mxu0 0.0
      %284 = vmatprep.subr.mxu0 0.0
      %285 = vmatpush2.msra.mxu0 0.0
      %286 = vmatprep.subr.mxu0 0.0
      %287 = vmatpush2.msra.mxu0 0.0
      %288 = vmatprep.subr.mxu0 0.0
      %289 = vmatpush2.msra.mxu0 0.0
      %290 = vmatprep.subr.mxu0 0.0
      %291 = vmatpush2.msra.mxu0 0.0
      %292 = vmatprep.subr.mxu0 0.0
      %293 = vmatpush2.msra.mxu0 0.0
      %294 = vmatprep.subr.mxu0 0.0
      %295 = vmatpush2.msra.mxu0 0.0
      %296 = vmatprep.subr.mxu0 0.0
      %297 = vmatpush2.msra.mxu0 0.0
      %298 = vmatprep.subr.mxu0 0.0
      %299 = vmatpush2.msra.mxu0 0.0
      %300 = vmatprep.subr.mxu0 0.0
      %301 = vmatpush2.msra.mxu0 0.0
      %302 = vmatprep.subr.mxu0 0.0
      %303 = vmatpush2.msra.mxu0 0.0
      %304 = vmatprep.subr.mxu0 0.0
      %305 = vmatpush2.msra.mxu0 0.0
      %306 = vmatprep.subr.mxu0 0.0
      %307 = vmatpush2.msra.mxu0 0.0
      %308 = vmatprep.subr.mxu0 0.0
      %309 = vmatpush2.msra.mxu0 0.0
      %310 = vmatprep.subr.mxu0 0.0
      %311 = vmatpush2.msra.mxu0 0.0
      %312 = vmatprep.mubr.f32.mxu0 0.0
      %313 = vmatmul.mubr.f32.gmra.mxu0 %v240
      %v314 = vpop.f32.mrf.mxu0
      %v315 = vadd.f32 %v236, %v314
      %v316 = vpop.f32.mrf.mxu0
      %317 = vmatprep.mubr.f32.mxu0 0.0
      %318 = vmatmul.mubr.f32.gmra.mxu0 %v243
      %v319 = vpop.f32.mrf.mxu0
      %v320 = vadd.f32 %v236, %v319
      %v321 = vpop.f32.mrf.mxu0
      %322 = vmatprep.mubr.f32.mxu0 0.0
      %323 = vmatmul.mubr.f32.gmra.mxu0 %v246
      %v324 = vpop.f32.mrf.mxu0
      %v325 = vadd.f32 %v236, %v324
      %v326 = vpop.f32.mrf.mxu0
      %327 = vdwg.mxu0
      %v328 = vmul.f32 %v315, 0.5
      %v329 = vmul.f32 %v320, 0.5
      %v330 = vmul.f32 %v325, 0.5
      %v331 = vmul.f32 %v315, 0.70710677
      %v332 = vmul.f32 %v320, 0.70710677
      %v333 = vmul.f32 %v325, 0.70710677
      %v334 = verf.f32.pop %v331
      %v335 = verf.f32.pop %v332
      %v336 = verf.f32.pop %v333
      %v337 = vadd.f32 %v334, 1.0
      %v338 = vadd.f32 %v335, 1.0
      %v339 = vadd.f32 %v336, 1.0
      %v340 = vmul.f32 %v328, %v337
      %v341 = vmul.f32 %v329, %v338
      %v342 = vmul.f32 %v330, %v339
      %343 = vst.msk [vmem:[%s222] sm:$0xff] %vm238, %v340
      %344 = vst.msk [vmem:[%s222 + $0x8] sm:$0xff] %vm238, %v341
      %vm345 = vcmask 257024
      %346 = vst.msk [vmem:[%s222 + $0x10] sm:$0xf] %vm345, %v342
      %s347 = smul.u32 3, %s19
      %p348 = scmp.lt.s32.totalorder %s18, 1
      %s349 = scalar_select %p348, %s18, 1
      %p350 = scmp.lt.s32.totalorder %s347, 2
      %s351 = scalar_select %p350, %s347, 2
      %s352 = smul.addr %s349, 3
      %s353 = sadd.s32 %s351, %s352
      %s354 = smul.addr %s353, 8
      %s355 = scalar_lea.vmem %s3, %s354
      // Predicated region
      $region33: #{tpu_custom_call.1} parent=31 // pred_check
        %p356 = pneg %p121
      $region34: #{tpu_custom_call.1} parent=31 // pred_check_branch
        %358 = sbr.rel (%p356) target = $region36
      $region35: #{tpu_custom_call.1} parent=31 // pred_region
        %s359 = smul.u32 3, %s19
      $region36: #{tpu_custom_call.1} parent=31 // pred_fallthru
        _
    $region32: #{tpu_custom_call.1} parent=5 // pred_fallthru
      _
    %p360 = scmp.le.s32.totalorder 2, %s9
    // Predicated region
    $region37: #{tpu_custom_call.1} parent=5 // pred_check
      %p361 = pneg %p360
    $region38: #{tpu_custom_call.1} parent=5 // pred_check_branch
      %363 = sbr.rel (%p361) target = $region40
    $region39: #{tpu_custom_call.1} parent=5 // pred_region
      %s364 = ssub.s32 %s9, 2
      // Predicated region
      $region41: #{tpu_custom_call.1} parent=39 // pred_check
        %p365 = pneg %p127
      $region42: #{tpu_custom_call.1} parent=39 // pred_check_branch
        %367 = sbr.rel (%p365) target = $region44
      $region43: #{tpu_custom_call.1} parent=39 // pred_region
        %s368 = smul.u32 3, %s21
        %p369 = scmp.lt.s32.totalorder %s20, 1
        %s370 = scalar_select %p369, %s20, 1
        %p371 = scmp.lt.s32.totalorder %s368, 2
        %s372 = scalar_select %p371, %s368, 2
        %s373 = smul.addr %s370, 3
        %s374 = sadd.s32 %s372, %s373
        %s375 = smul.addr %s374, 8
        %s376 = scalar_lea.vmem %s3, %s375
      $region44: #{tpu_custom_call.1} parent=39 // pred_fallthru
        _
    $region40: #{tpu_custom_call.1} parent=5 // pred_fallthru
      _
  $region6: #{tpu_custom_call.1} parent=0 // loop_footer
    %s13 = sadd.s32 1, %s9
  $region7: #{tpu_custom_call.1} parent=0 // loop_footer_branch
    %8 = sbr.rel target = $region3
  $region8: #{tpu_custom_call.1} parent=0 // loop_exit
    _

</llo_original>
